<compile_context>
chip_gen: v7x
topology: tpu7x:2x2x1
jax: 0.10.0
libtpu: 0.0.40
codegen_flags: <defaults>
</compile_context>

<pallas_src>
import jax
import jax.numpy as jnp
from jax.experimental import pallas as pl
from jax.experimental.pallas import tpu as pltpu


# ------------------------------ kernels --------------------------------------


def _fused_adj_first_kernel(adj_ref, x_ref, w_ref, o_ref):
    # adj_ref: (1, TR, N)   x_ref: (1, N, C*Fin)   w_ref: (C*Fin, C*Fout)
    # o_ref:   (1, TR, C*Fout)
    ax = jnp.dot(adj_ref[0], x_ref[0], preferred_element_type=jnp.float32)
    out = jnp.dot(ax.astype(w_ref.dtype), w_ref[...],
                  preferred_element_type=jnp.float32)
    o_ref[0] = out.astype(o_ref.dtype)


def _fused_sup_scratch_kernel(adj_ref, x_ref, w_ref, o_ref, sup_ref):
    # sup = x[b] @ W_blockdiag computed once per batch element (row tile r == 0),
    # kept resident in VMEM and reused by every adjacency row tile of that b.
    @pl.when(pl.program_id(1) == 0)
    def _():
        sup = jnp.dot(x_ref[0], w_ref[...], preferred_element_type=jnp.float32)
        sup_ref[...] = sup.astype(sup_ref.dtype)

    out = jnp.dot(adj_ref[0], sup_ref[...], preferred_element_type=jnp.float32)
    o_ref[0] = out.astype(o_ref.dtype)


def _adj_only_kernel(adj_ref, feat_ref, o_ref):
    # adj_ref: (1, TR, N)   feat_ref: (1, N, L)   o_ref: (1, TR, L)
    o_ref[0] = jnp.dot(adj_ref[0], feat_ref[0],
                       preferred_element_type=jnp.float32).astype(o_ref.dtype)


# ------------------------------ helpers --------------------------------------


def _round_up(v, m):
    return ((v + m - 1) // m) * m


def _vmem_budget_bytes():
    """Generation-aware VMEM ceiling: ~75% of physical capacity, capped at 100 MiB."""
    try:
        cap = int(pltpu.get_tpu_info().vmem_capacity_bytes)
    except Exception:  # info unavailable: fall back to a conservative 64 MiB part
        cap = 64 * 1024 * 1024
    return min(int(cap * 0.75), 100 * 1024 * 1024)


def _choose_row_tile(N, B, fixed_bytes, per_row_bytes, vmem_budget):
    """Largest multiple-of-8 adj row tile whose working set fits ~60% of the budget."""
    if N <= 8:
        return N
    cap = 2048 if vmem_budget >= (96 << 20) else 512   # 128 MiB parts vs 64 MiB v7x
    budget = int(vmem_budget * 0.6)                    # headroom for compiler scratch
    cands = []
    if N <= cap:
        cands.append(N)
    cands += [t for t in (2048, 1024, 512, 256, 128, 64, 32, 16, 8)
              if t <= cap and t < N]
    row_tile = 8
    for t in cands:
        if fixed_bytes + t * per_row_bytes <= budget:
            row_tile = t
            break
    # Expose >= 2 schedulable grid steps so both v7x TensorCores get work at B == 1.
    if B * ((N + row_tile - 1) // row_tile) < 2:
        row_tile = min(row_tile, max(8, _round_up((N + 1) // 2, 8)))
    return row_tile


# ------------------------------ wrapper --------------------------------------


def gcn_forward(x, adj, weight, bias=None, *, compute_dtype="auto",
                row_tile=None, force_mode=None):
    """out[b, c] = adj[b] @ (x[b, c] @ weight).

    `bias` is accepted for parity with the PyTorch module but, exactly like the
    module's forward, it is never applied.
    """
    B, C, N, Fin = x.shape
    Fout = weight.shape[1]
    assert weight.shape[0] == Fin
    out_dtype = jnp.float32

    # HBM-bound on the adj stream -> bf16 inputs (f32 accumulation) at large N.
    if compute_dtype == "auto":
        cdt = jnp.bfloat16 if N >= 1024 else jnp.float32
    elif compute_dtype is None:
        cdt = jnp.float32
    else:
        cdt = jnp.dtype(compute_dtype)
    itemsize = jnp.dtype(cdt).itemsize
    out_itemsize = jnp.dtype(out_dtype).itemsize

    vmem_budget = _vmem_budget_bytes()

    adj_first = Fin <= Fout
    # The block-diagonal weight only pays while C*Fin / C*Fout stay small; past that
    # the C^2-sparse weight wastes MXU flops and VMEM.
    fused = (C * Fin <= 256) and (C * Fout <= 256)
    if fused and not adj_first:
        # sup scratch (N, C*Fout) must stay resident for a whole batch element.
        fused = N * C * Fout * itemsize <= vmem_budget // 4
    if force_mode == "split":
        fused = False
    elif force_mode == "fused":
        fused = True

    # --- wrapper-side layout plumbing (pure XLA, outside the kernel) -------------
    # x_p[b, n, c*Fin + f] = x[b, c, n, f]  : lane-dense feature slab.
    x_p = jnp.transpose(x, (0, 2, 1, 3)).reshape(B, N, C * Fin)
    adj_c = adj.astype(cdt)

    if fused:
        # Block-diagonal weight applies W independently per channel without any
        # in-kernel reshape/transpose.
        w_block = jnp.einsum("cd,fo->cfdo", jnp.eye(C, dtype=weight.dtype),
                             weight).reshape(C * Fin, C * Fout).astype(cdt)
        x_c = x_p.astype(cdt)
        lane_in, lane_out = C * Fin, C * Fout

        fixed = 2 * N * lane_in * itemsize + 2 * lane_in * lane_out * itemsize
        if not adj_first:
            fixed += N * lane_out * itemsize        # sup scratch
        per_row = 2 * N * itemsize + 2 * lane_out * out_itemsize
        rt = row_tile or _choose_row_tile(N, B, fixed, per_row, vmem_budget)
        # TODO(synk): for N large enough that the (N, C*Fin) slab no longer fits VMEM,
        # add a contraction grid axis over adj columns with an f32 accumulator scratch.
        n_row_tiles = pl.cdiv(N, rt)

        if adj_first:
            kernel = _fused_adj_first_kernel
            scratch = []
            dims = ("parallel", "parallel")
            flops = 2 * B * N * (N * lane_in + lane_in * lane_out)
        else:
            kernel = _fused_sup_scratch_kernel
            scratch = [pltpu.VMEM((N, lane_out), cdt)]
            dims = ("parallel", "arbitrary")   # r == 0 must run before r > 0 per b
            flops = 2 * B * (N * lane_in * lane_out + N * N * lane_out)
        bytes_accessed = (adj_c.size * itemsize + x_c.size * itemsize
                          + w_block.size * itemsize
                          + B * N * lane_out * out_itemsize)

        out_p = pl.pallas_call(
            kernel,
            out_shape=jax.ShapeDtypeStruct((B, N, lane_out), out_dtype),
            grid_spec=pltpu.PrefetchScalarGridSpec(
                num_scalar_prefetch=0,
                grid=(B, n_row_tiles),
                in_specs=[
                    # adj row tile: streamed exactly once per batch element.
                    pl.BlockSpec((1, rt, N), lambda b, r: (b, r, 0)),
                    # x slab: block index constant across r -> one DMA per b.
                    pl.BlockSpec((1, N, lane_in), lambda b, r: (b, 0, 0)),
                    # block-diagonal weight: constant across the whole grid.
                    pl.BlockSpec((lane_in, lane_out), lambda b, r: (0, 0)),
                ],
                out_specs=pl.BlockSpec((1, rt, lane_out), lambda b, r: (b, r, 0)),
                scratch_shapes=scratch,
            ),
            compiler_params=pltpu.CompilerParams(
                dimension_semantics=dims, vmem_limit_bytes=vmem_budget),
            cost_estimate=pl.CostEstimate(flops=flops, transcendentals=0,
                                          bytes_accessed=bytes_accessed),
        )(adj_c, x_c, w_block)

        # Lane-dense (B, N, C*Fout) -> (B, C, N, Fout), outside the kernel.
        return out_p.reshape(B, N, C, Fout).transpose(0, 2, 1, 3)

    # --- split mode: weight applied per channel by XLA; kernel does only adj @ feat --
    if adj_first:
        feat = x_p.astype(cdt)                                  # apply W after kernel
        lane = C * Fin
    else:
        feat = jnp.einsum("bcnf,fo->bnco", x, weight).reshape(
            B, N, C * Fout).astype(cdt)                         # apply W before kernel
        lane = C * Fout

    fixed = 2 * N * lane * itemsize
    per_row = 2 * N * itemsize + 2 * lane * out_itemsize
    rt = row_tile or _choose_row_tile(N, B, fixed, per_row, vmem_budget)
    n_row_tiles = pl.cdiv(N, rt)
    flops = 2 * B * N * N * lane
    bytes_accessed = (adj_c.size * itemsize + feat.size * itemsize
                      + B * N * lane * out_itemsize)

    y = pl.pallas_call(
        _adj_only_kernel,
        out_shape=jax.ShapeDtypeStruct((B, N, lane), out_dtype),
        grid_spec=pltpu.PrefetchScalarGridSpec(
            num_scalar_prefetch=0,
            grid=(B, n_row_tiles),
            in_specs=[
                pl.BlockSpec((1, rt, N), lambda b, r: (b, r, 0)),
                pl.BlockSpec((1, N, lane), lambda b, r: (b, 0, 0)),
            ],
            out_specs=pl.BlockSpec((1, rt, lane), lambda b, r: (b, r, 0)),
        ),
        compiler_params=pltpu.CompilerParams(
            dimension_semantics=("parallel", "parallel"),
            vmem_limit_bytes=vmem_budget),
        cost_estimate=pl.CostEstimate(flops=flops, transcendentals=0,
                                      bytes_accessed=bytes_accessed),
    )(adj_c, feat)

    if adj_first:
        # y[b, n, c*Fin + f] = (adj @ x)[b, c, n, f]; apply W afterwards.
        return jnp.einsum("bncf,fo->bcno", y.reshape(B, N, C, Fin), weight)
    return y.reshape(B, N, C, Fout).transpose(0, 2, 1, 3)


# ------------------------------ self-test ------------------------------------


if __name__ == "__main__":
    def reference(x, adj, w):
        return jnp.einsum("bnm,bcmf->bcnf", adj,
                          jnp.einsum("bcni,io->bcno", x, w))

    def run_case(B, C, N, Fin, Fout, keys, **kw):
        kx, kadj, kwt = keys
        x = jax.random.normal(kx, (B, C, N, Fin), dtype=jnp.float32)
        adj = jax.random.normal(kadj, (B, N, N), dtype=jnp.float32)
        w = jax.random.normal(kwt, (Fin, Fout), dtype=jnp.float32) * 0.1
        b = jnp.zeros((Fout,), dtype=jnp.float32)   # unused in forward (matches torch)
        out = jax.block_until_ready(gcn_forward(x, adj, w, b, **kw))
        ref = reference(x, adj, w)
        assert out.shape == (B, C, N, Fout)
        assert jnp.allclose(out, ref, atol=1e-4, rtol=1e-4), "mismatch vs reference"

    keys = jax.random.split(jax.random.PRNGKey(0), 12)

    # 1) Fused adj-first path (Fin <= Fout) -- the module's nominal small shapes.
    run_case(2, 4, 16, 16, 32, keys[0:3])
    # 2) Fused sup-scratch path (Fout < Fin): x@W hoisted to once per batch element.
    run_case(2, 4, 16, 32, 16, keys[3:6])
    # 3) Split path: weight applied outside the kernel (large-C fallback).
    run_case(2, 4, 16, 16, 32, keys[6:9], force_mode="split")
    # 4) cdiv grid with a partial edge row tile (N not a multiple of the tile).
    run_case(2, 4, 24, 16, 32, keys[9:12], row_tile=16)

    print("KERNEL_OK")
</pallas_src>

<mosaic_0001>
module attributes {stable_mosaic.version = 11 : i64} {
  func.func @_fused_adj_first_kernel(%arg0: i32, %arg1: i32, %arg2: memref<1x16x16xf32, #tpu.memory_space<vmem>>, %arg3: memref<1x16x64xf32, #tpu.memory_space<vmem>>, %arg4: memref<64x128xf32, #tpu.memory_space<vmem>>, %arg5: memref<1x16x128xf32, #tpu.memory_space<vmem>>) attributes {dimension_semantics = [#tpu.dimension_semantics<parallel>, #tpu.dimension_semantics<parallel>], iteration_bounds = array<i64: 2, 1>, scalar_prefetch = 0 : i64, scratch_operands = 0 : i64, tpu.core_type = #tpu.core_type<tc>, window_params = [{transform_indices = @transform_0, window_bounds = array<i64: 1, 16, 16>}, {transform_indices = @transform_1, window_bounds = array<i64: 1, 16, 64>}, {pipeline_mode = #tpu.pipeline_mode<synchronous>, transform_indices = @transform_2, window_bounds = array<i64: 64, 128>}, {transform_indices = @transform_3, window_bounds = array<i64: 1, 16, 128>}]} {
    %c0 = arith.constant 0 : index
    %c0_0 = arith.constant 0 : index
    %c0_1 = arith.constant 0 : index
    %0 = vector.load %arg2[%c0, %c0_0, %c0_1] : memref<1x16x16xf32, #tpu.memory_space<vmem>>, vector<1x16x16xf32>
    %1 = vector.shape_cast %0 : vector<1x16x16xf32> to vector<16x16xf32>
    %c0_2 = arith.constant 0 : index
    %c0_3 = arith.constant 0 : index
    %c0_4 = arith.constant 0 : index
    %2 = vector.load %arg3[%c0_2, %c0_3, %c0_4] : memref<1x16x64xf32, #tpu.memory_space<vmem>>, vector<1x16x64xf32>
    %3 = vector.shape_cast %2 : vector<1x16x64xf32> to vector<16x64xf32>
    %cst = arith.constant dense<0.000000e+00> : vector<16x64xf32>
    %4 = tpu.matmul %1, %3, %cst {dimension_numbers = #tpu.dot_dimension_numbers<[1], [0], [0], [1], [0, 0, 1, 1], [], []>} : vector<16x16xf32>, vector<16x64xf32>, vector<16x64xf32> -> vector<16x64xf32>
    %c0_5 = arith.constant 0 : index
    %c0_6 = arith.constant 0 : index
    %5 = vector.load %arg4[%c0_5, %c0_6] : memref<64x128xf32, #tpu.memory_space<vmem>>, vector<64x128xf32>
    %cst_7 = arith.constant dense<0.000000e+00> : vector<16x128xf32>
    %6 = tpu.matmul %4, %5, %cst_7 {dimension_numbers = #tpu.dot_dimension_numbers<[1], [0], [0], [1], [0, 0, 1, 1], [], []>} : vector<16x64xf32>, vector<64x128xf32>, vector<16x128xf32> -> vector<16x128xf32>
    %c0_8 = arith.constant 0 : index
    %c0_9 = arith.constant 0 : index
    %c0_10 = arith.constant 0 : index
    %7 = vector.load %arg5[%c0_8, %c0_9, %c0_10] : memref<1x16x128xf32, #tpu.memory_space<vmem>>, vector<1x16x128xf32>
    %8 = vector.shape_cast %7 : vector<1x16x128xf32> to vector<16x128xf32>
    %9 = vector.shape_cast %6 : vector<16x128xf32> to vector<1x16x128xf32>
    tpu.vector_store %arg5[%c0_8, %c0_9, %c0_10], %9 {strides = array<i32>} : memref<1x16x128xf32, #tpu.memory_space<vmem>>, vector<1x16x128xf32>,
    return
  }
  func.func @transform_0(%arg0: i32, %arg1: i32) -> (i32, i32, i32) {
    %c0_i32 = arith.constant 0 : i32
    %c0_i32_0 = arith.constant 0 : i32
    return %arg0, %arg1, %c0_i32 : i32, i32, i32
  }
  func.func @transform_1(%arg0: i32, %arg1: i32) -> (i32, i32, i32) {
    %c0_i32 = arith.constant 0 : i32
    %c0_i32_0 = arith.constant 0 : i32
    %c0_i32_1 = arith.constant 0 : i32
    return %arg0, %c0_i32, %c0_i32_0 : i32, i32, i32
  }
  func.func @transform_2(%arg0: i32, %arg1: i32) -> (i32, i32) {
    %c0_i32 = arith.constant 0 : i32
    %c0_i32_0 = arith.constant 0 : i32
    %c0_i32_1 = arith.constant 0 : i32
    return %c0_i32, %c0_i32_0 : i32, i32
  }
  func.func @transform_3(%arg0: i32, %arg1: i32) -> (i32, i32, i32) {
    %c0_i32 = arith.constant 0 : i32
    %c0_i32_0 = arith.constant 0 : i32
    return %arg0, %arg1, %c0_i32 : i32, i32, i32
  }
}

</mosaic_0001>

<llo_original>
// kernel: tpu_custom_call.1
$region0: #{tpu_custom_call.1}
  #allocation0 [shape = 'u32[]', space=smem, size = 0x4, offset = 0x4, fixed_abs, tag = 'smem constant byte address 0x4 - core index']
  #allocation1 [shape = 'u32[144,128]{1,0:T(1,128)}', space=vmem, size = 0x12000, scoped, tag = 'internal scratch']
  %s0 = inlined_call_operand.hbm [shape: f32[2,16,16], index: 0, kind: input, shape index: {}]
  %s1 = inlined_call_operand.hbm [shape: f32[2,16,64], index: 1, kind: input, shape index: {}]
  %s2 = inlined_call_operand.hbm [shape: f32[64,128], index: 2, kind: input, shape index: {}]
  %s3 = inlined_call_operand.hbm [shape: f32[2,16,128], index: 3, kind: output, shape index: {}]
  %s4 = sld [smem:[#allocation0]]
  $region57: #{tpu_custom_call.1} parent=0
    _
  %s6 = ssub.s32 1, %s4
  %s7 = scalar_select 0, %s6, %s4
  $region1: #{tpu_custom_call.1} parent=0
    #allocation2 [shape = 'u8[16384]{0}', space=vmem, size = 0x4000, scoped, tag = 'input window, operand 0']
    #allocation3 [shape = 's32[2]{0}', space=sflag, size = 0x8, scoped, tag = 'scoped memory for tpu_custom_call.1']
    #allocation4 [shape = 's32[2]{0}', space=sflag, size = 0x8, scoped, tag = 'scoped memory for tpu_custom_call.1']
    #allocation5 [shape = 'u8[16384]{0}', space=vmem, size = 0x4000, scoped, tag = 'input window, operand 1']
    #allocation6 [shape = 's32[2]{0}', space=sflag, size = 0x8, scoped, tag = 'scoped memory for tpu_custom_call.1']
    #allocation7 [shape = 'u8[32768]{0}', space=vmem, size = 0x8000, scoped, tag = 'input window, operand 2, single buffered']
    #allocation8 [shape = 'u8[16384]{0}', space=vmem, size = 0x4000, scoped, tag = 'output window, operand 0']
    %8 = vsyncpa [#allocation3], 0
    %s9 = scalar_lea.sflag [#allocation3], 1
    %10 = vsyncpa %s9, 0
    %11 = vsyncpa [#allocation6], 0
    %s12 = scalar_lea.sflag [#allocation6], 1
    %13 = vsyncpa %s12, 0
    %14 = vsyncpa [#allocation4], 0
    %s15 = scalar_lea.sflag [#allocation4], 1
    %16 = vsyncpa %s15, 0
    loop: start=0, step=1, limit=4
    $region2: #{tpu_custom_call.1} parent=1 // loop_pre_header
      _
    $region3: #{tpu_custom_call.1} parent=1 // loop_header
      %s18 = sphi 0, %s22
      %p19 = scmp.ge.s32.totalorder %s18, 4
      %s25 = sphi 0, %s37
      %s26 = sphi 0, %s33
      %s27 = sphi 0, %s25
      %s28 = sphi 0, %s26
      %s29 = sphi 0, %s27
      %s30 = sphi 0, %s28
      %s42 = sphi 0, %s44
      %s45 = sphi 0, %s42
      %s46 = sphi 0, %s45
      %s62 = sphi 0, %s46
      %s68 = sphi 0, %s70
      %s71 = sphi 0, %s68
      %s72 = sphi 0, %s71
      %s88 = sphi 0, %s72
      %s92 = sphi 0, %s92
      %s94 = sphi 0, %s92
      %s95 = sphi 0, %s94
      %s109 = sphi 0, %s95
      %s117 = sphi 0, %s119
      %s120 = sphi 0, %s117
      %s121 = sphi 0, %s120
      %s137 = sphi 0, %s121
    $region4: #{tpu_custom_call.1} parent=1 // loop_header_branch
      %21 = sbr.rel (%p19) target = $region8
    $region5: #{tpu_custom_call.1} parent=1 // loop_body
      %s23 = ssub.s32 %s18, 1
      %s24 = ssub.s32 %s18, 2
      %s31 = sadd.s32 1, %s26
      %p32 = scmp.ge.s32.totalorder %s31, 1
      %s33 = scalar_select %p32, 0, %s31
      %s34 = sadd.s32 1, %s25
      %s35 = scalar_select %p32, %s34, %s25
      %p36 = scmp.ge.s32.totalorder %s35, 2
      %s37 = scalar_select %p36, 0, %s35
      %s38 = ssub.s32 %s25, %s37
      %s39 = ssub.s32 %s26, %s33
      %s40 = sor.u32 %s38, %s39
      %p41 = scmp.eq.s32.totalorder %s40, 0
      %s43 = sadd.s32 %s42, 1
      %s44 = scalar_select %p41, %s42, %s43
      %p47 = pneg %p41
      %p48 = scmp.eq.s32.totalorder %s18, 1
      %p49 = por %p47, %p48
      %p50 = scmp.ne.s32.totalorder %s42, %s45
      %p51 = scmp.eq.s32.totalorder %s18, 0
      %p52 = por %p50, %p51
      %p53 = scmp.ne.s32.totalorder %s42, %s45
      %p54 = scmp.eq.s32.totalorder %s23, 1
      %p55 = por %p53, %p54
      %p56 = scmp.ne.s32.totalorder %s45, %s46
      %p57 = scmp.eq.s32.totalorder %s23, 0
      %p58 = por %p56, %p57
      %p59 = scmp.ne.s32.totalorder %s45, %s46
      %p60 = scmp.eq.s32.totalorder %s24, 1
      %p61 = por %p59, %p60
      %p63 = scmp.ne.s32.totalorder %s46, %s62
      %p64 = scmp.eq.s32.totalorder %s24, 0
      %p65 = por %p63, %p64
      %s66 = ssub.s32 %s25, %s37
      %p67 = scmp.eq.s32.totalorder %s66, 0
      %s69 = sadd.s32 %s68, 1
      %s70 = scalar_select %p67, %s68, %s69
      %p73 = pneg %p67
      %p74 = scmp.eq.s32.totalorder %s18, 1
      %p75 = por %p73, %p74
      %p76 = scmp.ne.s32.totalorder %s68, %s71
      %p77 = scmp.eq.s32.totalorder %s18, 0
      %p78 = por %p76, %p77
      %p79 = scmp.ne.s32.totalorder %s68, %s71
      %p80 = scmp.eq.s32.totalorder %s23, 1
      %p81 = por %p79, %p80
      %p82 = scmp.ne.s32.totalorder %s71, %s72
      %p83 = scmp.eq.s32.totalorder %s23, 0
      %p84 = por %p82, %p83
      %p85 = scmp.ne.s32.totalorder %s71, %s72
      %p86 = scmp.eq.s32.totalorder %s24, 1
      %p87 = por %p85, %p86
      %p89 = scmp.ne.s32.totalorder %s72, %s88
      %p90 = scmp.eq.s32.totalorder %s24, 0
      %p91 = por %p89, %p90
      %s93 = sadd.s32 %s92, 1
      %p96 = scmp.eq.s32.totalorder %s18, 1
      %p97 = scmp.ne.s32.totalorder %s92, %s94
      %p98 = scmp.eq.s32.totalorder %s18, 0
      %p99 = por %p97, %p98
      %p100 = scmp.ne.s32.totalorder %s92, %s94
      %p101 = scmp.eq.s32.totalorder %s23, 1
      %p102 = por %p100, %p101
      %p103 = scmp.ne.s32.totalorder %s94, %s95
      %p104 = scmp.eq.s32.totalorder %s23, 0
      %p105 = por %p103, %p104
      %p106 = scmp.ne.s32.totalorder %s94, %s95
      %p107 = scmp.eq.s32.totalorder %s24, 1
      %p108 = por %p106, %p107
      %p110 = scmp.ne.s32.totalorder %s95, %s109
      %p111 = scmp.eq.s32.totalorder %s24, 0
      %p112 = por %p110, %p111
      %s113 = ssub.s32 %s25, %s37
      %s114 = ssub.s32 %s26, %s33
      %s115 = sor.u32 %s113, %s114
      %p116 = scmp.eq.s32.totalorder %s115, 0
      %s118 = sadd.s32 %s117, 1
      %s119 = scalar_select %p116, %s117, %s118
      %p122 = pneg %p116
      %p123 = scmp.eq.s32.totalorder %s18, 1
      %p124 = por %p122, %p123
      %p125 = scmp.ne.s32.totalorder %s117, %s120
      %p126 = scmp.eq.s32.totalorder %s18, 0
      %p127 = por %p125, %p126
      %p128 = scmp.ne.s32.totalorder %s117, %s120
      %p129 = scmp.eq.s32.totalorder %s23, 1
      %p130 = por %p128, %p129
      %p131 = scmp.ne.s32.totalorder %s120, %s121
      %p132 = scmp.eq.s32.totalorder %s23, 0
      %p133 = por %p131, %p132
      %p134 = scmp.ne.s32.totalorder %s120, %s121
      %p135 = scmp.eq.s32.totalorder %s24, 1
      %p136 = por %p134, %p135
      %p138 = scmp.ne.s32.totalorder %s121, %s137
      %p139 = scmp.eq.s32.totalorder %s24, 0
      %p140 = por %p138, %p139
      %p141 = scmp.le.s32.totalorder 1, %s18
      %p142 = scmp.lt.s32.totalorder %s18, 3
      %p143 = pnand %p141, %p142
      %p144 = pneg %p143
      // Predicated region
      $region9: #{tpu_custom_call.1} parent=5 // pred_check
        _
      $region10: #{tpu_custom_call.1} parent=5 // pred_check_branch
        %146 = sbr.rel (%p143) target = $region12
      $region11: #{tpu_custom_call.1} parent=5 // pred_region
        %s147 = ssub.s32 %s18, 1
        // Predicated region
        $region13: #{tpu_custom_call.1} parent=11 // pred_check
          %p148 = pneg %p105
        $region14: #{tpu_custom_call.1} parent=11 // pred_check_branch
          %150 = sbr.rel (%p148) target = $region16
        $region15: #{tpu_custom_call.1} parent=11 // pred_region
          %s152 = ssub.s32 1024, 1024
          %153 = vsyncadd [#allocation6], %s152
          %s154 = sshll.u32 [#allocation7], 4
          %s155 = int_to_ptr.vmem [resolvable:$true] %s154
          %160 = dma.hbm_to_vmem [thread:$0]  %s2, 1024, %s155, [#allocation6], 128, 128, 8
        $region16: #{tpu_custom_call.1} parent=11 // pred_fallthru
          _
      $region12: #{tpu_custom_call.1} parent=5 // pred_fallthru
        _
      %p161 = scmp.lt.s32.totalorder %s18, 2
      // Predicated region
      $region17: #{tpu_custom_call.1} parent=5 // pred_check
        %p162 = pneg %p161
      $region18: #{tpu_custom_call.1} parent=5 // pred_check_branch
        %164 = sbr.rel (%p162) target = $region20
      $region19: #{tpu_custom_call.1} parent=5 // pred_region
        // Predicated region
        $region21: #{tpu_custom_call.1} parent=19 // pred_check
          %p165 = pneg %p52
        $region22: #{tpu_custom_call.1} parent=19 // pred_check_branch
          %167 = sbr.rel (%p165) target = $region24
        $region23: #{tpu_custom_call.1} parent=19 // pred_region
          %s168 = sand.u32 %s42, 1
          %s169 = scalar_lea.sflag [#allocation3], %s168
          %s170 = sand.u32 %s42, 1
          %s171 = smul.addr %s170, 16
          %s172 = scalar_lea.vmem [#allocation2], %s171
          %s173 = smul.u32 2, %s26
          %s175 = ssub.s32 256, 256
          %176 = vsyncadd %s169, %s175
          %s177 = smul.addr %s25, 2
          %s178 = sadd.s32 %s173, %s177
          %s179 = smul.addr %s178, 128
          %s180 = scalar_lea.hbm %s0, %s179
          %s181 = sshll.u32 %s172, 4
          %s182 = int_to_ptr.vmem [resolvable:$true] %s181
          %187 = dma.hbm_to_vmem [thread:$0]  %s180, 256, %s182, %s169, 128, 128, 8
        $region24: #{tpu_custom_call.1} parent=19 // pred_fallthru
          _
        // Predicated region
        $region25: #{tpu_custom_call.1} parent=19 // pred_check
          %p188 = pneg %p78
        $region26: #{tpu_custom_call.1} parent=19 // pred_check_branch
          %190 = sbr.rel (%p188) target = $region28
        $region27: #{tpu_custom_call.1} parent=19 // pred_region
          %s191 = sand.u32 %s18, 1
          %s192 = scalar_lea.sflag [#allocation6], %s191
          %s193 = sand.u32 %s68, 1
          %s194 = smul.addr %s193, 16
          %s195 = scalar_lea.vmem [#allocation5], %s194
          %s197 = ssub.s32 256, 256
          %198 = vsyncadd %s192, %s197
          %s199 = smul.addr %s25, 2
          %s200 = smul.addr %s199, 128
          %s201 = scalar_lea.hbm %s1, %s200
          %s202 = sshll.u32 %s195, 4
          %s203 = int_to_ptr.vmem [resolvable:$true] %s202
          %208 = dma.hbm_to_vmem [thread:$0]  %s201, 256, %s203, %s192, 128, 128, 8
        $region28: #{tpu_custom_call.1} parent=19 // pred_fallthru
          _
      $region20: #{tpu_custom_call.1} parent=5 // pred_fallthru
        _
      %p209 = scmp.le.s32.totalorder 1, %s18
      %p210 = scmp.lt.s32.totalorder %s18, 3
      %p211 = pnand %p209, %p210
      %p212 = pneg %p211
      // Predicated region
      $region29: #{tpu_custom_call.1} parent=5 // pred_check
        _
      $region30: #{tpu_custom_call.1} parent=5 // pred_check_branch
        %214 = sbr.rel (%p211) target = $region32
      $region31: #{tpu_custom_call.1} parent=5 // pred_region
        %s215 = ssub.s32 %s18, 1
        %s216 = sand.u32 %s45, 1
        %s217 = scalar_lea.sflag [#allocation3], %s216
        %s218 = sand.u32 %s45, 1
        %s219 = smul.addr %s218, 16
        %s220 = scalar_lea.vmem [#allocation2], %s219
        // Predicated region
        $region33: #{tpu_custom_call.1} parent=31 // pred_check
          %p221 = pneg %p58
        $region34: #{tpu_custom_call.1} parent=31 // pred_check_branch
          %223 = sbr.rel (%p221) target = $region36
        $region35: #{tpu_custom_call.1} parent=31 // pred_region
          %224 = dma.done %s217, 256
        $region36: #{tpu_custom_call.1} parent=31 // pred_fallthru
          _
        %s225 = sand.u32 %s23, 1
        %s226 = scalar_lea.sflag [#allocation6], %s225
        %s227 = sand.u32 %s71, 1
        %s228 = smul.addr %s227, 16
        %s229 = scalar_lea.vmem [#allocation5], %s228
        // Predicated region
        $region37: #{tpu_custom_call.1} parent=31 // pred_check
          %p230 = pneg %p84
        $region38: #{tpu_custom_call.1} parent=31 // pred_check_branch
          %232 = sbr.rel (%p230) target = $region40
        $region39: #{tpu_custom_call.1} parent=31 // pred_region
          %233 = dma.done %s226, 256
        $region40: #{tpu_custom_call.1} parent=31 // pred_fallthru
          _
        // Predicated region
        $region41: #{tpu_custom_call.1} parent=31 // pred_check
          %p234 = pneg %p105
        $region42: #{tpu_custom_call.1} parent=31 // pred_check_branch
          %236 = sbr.rel (%p234) target = $region44
        $region43: #{tpu_custom_call.1} parent=31 // pred_region
          %237 = dma.done [#allocation6], 1024
        $region44: #{tpu_custom_call.1} parent=31 // pred_fallthru
          _
        %s238 = sand.u32 %s45, 1
        %s239 = scalar_lea.sflag [#allocation3], %s238
        %s240 = sand.u32 %s45, 1
        %s241 = smul.addr %s240, 16
        %s242 = scalar_lea.vmem [#allocation2], %s241
        %p243 = pneg %p58
        %p244 = pneg %p55
        %s245 = sand.u32 %s23, 1
        %s246 = scalar_lea.sflag [#allocation6], %s245
        %s247 = sand.u32 %s71, 1
        %s248 = smul.addr %s247, 16
        %s249 = scalar_lea.vmem [#allocation5], %s248
        %p250 = pneg %p84
        %p251 = pneg %p81
        %p252 = pneg %p105
        %p253 = pneg %p102
        %p254 = pneg %p133
        %p255 = pneg %p130
        %s256 = sand.u32 %s120, 1
        %s257 = scalar_lea.sflag [#allocation4], %s256
        %s258 = sand.u32 %s120, 1
        %s259 = smul.addr %s258, 16
        %s260 = scalar_lea.vmem [#allocation8], %s259
        %s261 = smul.u32 2, %s28
        %s262 = smul.u32 2, %s28
        %v263 = vld [vmem:[%s220] sm:$0xff]
        %v264 = vld [vmem:[%s220 + $0x8] sm:$0xff]
        %v265 = vld [vmem:[%s229] sm:$0xff]
        %v266 = vld [vmem:[%s229 + $0x8] sm:$0xff]
        %vm267 = vcmask 130048
        %v269 = vsel %vm267, %v263, 0
        %v272 = vsel %vm267, %v264, 0
        %274 = vmatprep.subr.mxu0 0.0
        %275 = vmatpush1.msra.mxu0 %v265
        %276 = vmatprep.subr.mxu0 0.0
        %277 = vmatpush1.msra.mxu0 %v266
        %278 = vmatprep.subr.mxu0 0.0
        %279 = vmatpush1.msra.mxu0 0.0
        %280 = vmatprep.subr.mxu0 0.0
        %281 = vmatpush1.msra.mxu0 0.0
        %282 = vmatprep.subr.mxu0 0.0
        %283 = vmatpush1.msra.mxu0 0.0
        %284 = vmatprep.subr.mxu0 0.0
        %285 = vmatpush1.msra.mxu0 0.0
        %286 = vmatprep.subr.mxu0 0.0
        %287 = vmatpush1.msra.mxu0 0.0
        %288 = vmatprep.subr.mxu0 0.0
        %289 = vmatpush1.msra.mxu0 0.0
        %290 = vmatprep.subr.mxu0 0.0
        %291 = vmatpush1.msra.mxu0 0.0
        %292 = vmatprep.subr.mxu0 0.0
        %293 = vmatpush1.msra.mxu0 0.0
        %294 = vmatprep.subr.mxu0 0.0
        %295 = vmatpush1.msra.mxu0 0.0
        %296 = vmatprep.subr.mxu0 0.0
        %297 = vmatpush1.msra.mxu0 0.0
        %298 = vmatprep.subr.mxu0 0.0
        %299 = vmatpush1.msra.mxu0 0.0
        %300 = vmatprep.subr.mxu0 0.0
        %301 = vmatpush1.msra.mxu0 0.0
        %302 = vmatprep.subr.mxu0 0.0
        %303 = vmatpush1.msra.mxu0 0.0
        %304 = vmatprep.subr.mxu0 0.0
        %305 = vmatpush1.msra.mxu0 0.0
        %306 = vmatprep.subr.mxu0 0.0
        %307 = vmatpush1.msra.mxu0 0.0
        %308 = vmatprep.subr.mxu0 0.0
        %309 = vmatpush1.msra.mxu0 0.0
        %310 = vmatprep.subr.mxu0 0.0
        %311 = vmatpush1.msra.mxu0 0.0
        %312 = vmatprep.subr.mxu0 0.0
        %313 = vmatpush1.msra.mxu0 0.0
        %314 = vmatprep.subr.mxu0 0.0
        %315 = vmatpush1.msra.mxu0 0.0
        %316 = vmatprep.subr.mxu0 0.0
        %317 = vmatpush1.msra.mxu0 0.0
        %318 = vmatprep.subr.mxu0 0.0
        %319 = vmatpush1.msra.mxu0 0.0
        %320 = vmatprep.subr.mxu0 0.0
        %321 = vmatpush1.msra.mxu0 0.0
        %322 = vmatprep.subr.mxu0 0.0
        %323 = vmatpush1.msra.mxu0 0.0
        %324 = vmatprep.subr.mxu0 0.0
        %325 = vmatpush1.msra.mxu0 0.0
        %326 = vmatprep.subr.mxu0 0.0
        %327 = vmatpush1.msra.mxu0 0.0
        %328 = vmatprep.subr.mxu0 0.0
        %329 = vmatpush1.msra.mxu0 0.0
        %330 = vmatprep.subr.mxu0 0.0
        %331 = vmatpush1.msra.mxu0 0.0
        %332 = vmatprep.subr.mxu0 0.0
        %333 = vmatpush1.msra.mxu0 0.0
        %334 = vmatprep.subr.mxu0 0.0
        %335 = vmatpush1.msra.mxu0 0.0
        %336 = vmatprep.subr.mxu0 0.0
        %337 = vmatpush1.msra.mxu0 0.0
        %338 = vmatprep.mubr.f32.mxu0 0.0
        %339 = vmatmul.mubr.f32.gmra.mrb[0].mxu0 %v269
        %v340 = vpop.f32.mrb[0].mxu0
        %v341 = vadd.f32 0.0, %v340
        %v342 = vpop.f32.mrb[0].mxu0
        %343 = vmatprep.mubr.f32.mxu0 0.0
        %344 = vmatmul.mubr.f32.gmra.mrb[0].mxu0 %v272
        %v345 = vpop.f32.mrb[0].mxu0
        %v346 = vadd.f32 0.0, %v345
        %v347 = vpop.f32.mrb[0].mxu0
        %348 = vdwg.mxu0
        %v349 = vld [vmem:[#allocation7] sm:$0xff]
        %v350 = vld [vmem:[#allocation7 + $0x8] sm:$0xff]
        %v351 = vld [vmem:[#allocation7 + $0x10] sm:$0xff]
        %v352 = vld [vmem:[#allocation7 + $0x18] sm:$0xff]
        %v353 = vld [vmem:[#allocation7 + $0x20] sm:$0xff]
        %v354 = vld [vmem:[#allocation7 + $0x28] sm:$0xff]
        %v355 = vld [vmem:[#allocation7 + $0x30] sm:$0xff]
        %v356 = vld [vmem:[#allocation7 + $0x38] sm:$0xff]
        %vm357 = vcmask 523264
        %v359 = vsel %vm357, %v341, 0
        %v362 = vsel %vm357, %v346, 0
        %364 = vmatprep.subr.mxu0 0.0
        %365 = vmatpush1.msra.mxu0 %v349
        %366 = vmatprep.subr.mxu0 0.0
        %367 = vmatpush1.msra.mxu0 %v350
        %368 = vmatprep.subr.mxu0 0.0
        %369 = vmatpush1.msra.mxu0 %v351
        %370 = vmatprep.subr.mxu0 0.0
        %371 = vmatpush1.msra.mxu0 %v352
        %372 = vmatprep.subr.mxu0 0.0
        %373 = vmatpush1.msra.mxu0 %v353
        %374 = vmatprep.subr.mxu0 0.0
        %375 = vmatpush1.msra.mxu0 %v354
        %376 = vmatprep.subr.mxu0 0.0
        %377 = vmatpush1.msra.mxu0 %v355
        %378 = vmatprep.subr.mxu0 0.0
        %379 = vmatpush1.msra.mxu0 %v356
        %380 = vmatprep.subr.mxu0 0.0
        %381 = vmatpush1.msra.mxu0 0.0
        %382 = vmatprep.subr.mxu0 0.0
        %383 = vmatpush1.msra.mxu0 0.0
        %384 = vmatprep.subr.mxu0 0.0
        %385 = vmatpush1.msra.mxu0 0.0
        %386 = vmatprep.subr.mxu0 0.0
        %387 = vmatpush1.msra.mxu0 0.0
        %388 = vmatprep.subr.mxu0 0.0
        %389 = vmatpush1.msra.mxu0 0.0
        %390 = vmatprep.subr.mxu0 0.0
        %391 = vmatpush1.msra.mxu0 0.0
        %392 = vmatprep.subr.mxu0 0.0
        %393 = vmatpush1.msra.mxu0 0.0
        %394 = vmatprep.subr.mxu0 0.0
        %395 = vmatpush1.msra.mxu0 0.0
        %396 = vmatprep.subr.mxu0 0.0
        %397 = vmatpush1.msra.mxu0 0.0
        %398 = vmatprep.subr.mxu0 0.0
        %399 = vmatpush1.msra.mxu0 0.0
        %400 = vmatprep.subr.mxu0 0.0
        %401 = vmatpush1.msra.mxu0 0.0
        %402 = vmatprep.subr.mxu0 0.0
        %403 = vmatpush1.msra.mxu0 0.0
        %404 = vmatprep.subr.mxu0 0.0
        %405 = vmatpush1.msra.mxu0 0.0
        %406 = vmatprep.subr.mxu0 0.0
        %407 = vmatpush1.msra.mxu0 0.0
        %408 = vmatprep.subr.mxu0 0.0
        %409 = vmatpush1.msra.mxu0 0.0
        %410 = vmatprep.subr.mxu0 0.0
        %411 = vmatpush1.msra.mxu0 0.0
        %412 = vmatprep.subr.mxu0 0.0
        %413 = vmatpush1.msra.mxu0 0.0
        %414 = vmatprep.subr.mxu0 0.0
        %415 = vmatpush1.msra.mxu0 0.0
        %416 = vmatprep.subr.mxu0 0.0
        %417 = vmatpush1.msra.mxu0 0.0
        %418 = vmatprep.subr.mxu0 0.0
        %419 = vmatpush1.msra.mxu0 0.0
        %420 = vmatprep.subr.mxu0 0.0
        %421 = vmatpush1.msra.mxu0 0.0
        %422 = vmatprep.subr.mxu0 0.0
        %423 = vmatpush1.msra.mxu0 0.0
        %424 = vmatprep.subr.mxu0 0.0
        %425 = vmatpush1.msra.mxu0 0.0
        %426 = vmatprep.subr.mxu0 0.0
        %427 = vmatpush1.msra.mxu0 0.0
        %428 = vmatprep.mubr.f32.mxu0 0.0
        %429 = vmatmul.mubr.f32.gmra.mrb[0].mxu0 %v359
        %v430 = vpop.f32.mrb[0].mxu0
        %v431 = vadd.f32 0.0, %v430
        %v432 = vpop.f32.mrb[0].mxu0
        %433 = vmatprep.mubr.f32.mxu0 0.0
        %434 = vmatmul.mubr.f32.gmra.mrb[0].mxu0 %v362
        %v435 = vpop.f32.mrb[0].mxu0
        %v436 = vadd.f32 0.0, %v435
        %v437 = vpop.f32.mrb[0].mxu0
        %438 = vdwg.mxu0
        %439 = vst [vmem:[%s260] sm:$0xff] %v431
        %440 = vst [vmem:[%s260 + $0x8] sm:$0xff] %v436
        %s441 = sand.u32 %s120, 1
        %s442 = scalar_lea.sflag [#allocation4], %s441
        %s443 = sand.u32 %s120, 1
        %s444 = smul.addr %s443, 16
        %s445 = scalar_lea.vmem [#allocation8], %s444
        // Predicated region
        $region45: #{tpu_custom_call.1} parent=31 // pred_check
          %p446 = pneg %p130
        $region46: #{tpu_custom_call.1} parent=31 // pred_check_branch
          %448 = sbr.rel (%p446) target = $region48
        $region47: #{tpu_custom_call.1} parent=31 // pred_region
          %s449 = smul.u32 2, %s28
          %s451 = ssub.s32 256, 256
          %452 = vsyncadd %s442, %s451
          %s453 = smul.addr %s27, 2
          %s454 = sadd.s32 %s449, %s453
          %s455 = smul.addr %s454, 128
          %s456 = scalar_lea.hbm %s3, %s455
          %s457 = sshll.u32 %s445, 4
          %s458 = int_to_ptr.vmem [resolvable:$true] %s457
          %463 = dma.vmem_to_hbm [thread:$0]  %s458, 256, %s456, %s442, 128, 128, 8
        $region48: #{tpu_custom_call.1} parent=31 // pred_fallthru
          _
      $region32: #{tpu_custom_call.1} parent=5 // pred_fallthru
        _
      %p464 = scmp.le.s32.totalorder 2, %s18
      // Predicated region
      $region49: #{tpu_custom_call.1} parent=5 // pred_check
        %p465 = pneg %p464
      $region50: #{tpu_custom_call.1} parent=5 // pred_check_branch
        %467 = sbr.rel (%p465) target = $region52
      $region51: #{tpu_custom_call.1} parent=5 // pred_region
        %s468 = ssub.s32 %s18, 2
        // Predicated region
        $region53: #{tpu_custom_call.1} parent=51 // pred_check
          %p469 = pneg %p136
        $region54: #{tpu_custom_call.1} parent=51 // pred_check_branch
          %471 = sbr.rel (%p469) target = $region56
        $region55: #{tpu_custom_call.1} parent=51 // pred_region
          %s472 = sand.u32 %s121, 1
          %s473 = scalar_lea.sflag [#allocation4], %s472
          %s474 = sand.u32 %s121, 1
          %s475 = smul.addr %s474, 16
          %s476 = scalar_lea.vmem [#allocation8], %s475
          %477 = dma.done %s473, 256
        $region56: #{tpu_custom_call.1} parent=51 // pred_fallthru
          _
      $region52: #{tpu_custom_call.1} parent=5 // pred_fallthru
        _
    $region6: #{tpu_custom_call.1} parent=1 // loop_footer
      %s22 = sadd.s32 1, %s18
    $region7: #{tpu_custom_call.1} parent=1 // loop_footer_branch
      %17 = sbr.rel target = $region3
    $region8: #{tpu_custom_call.1} parent=1 // loop_exit
      _
    %478 = vsyncpa [#allocation3], 1
    %s479 = scalar_lea.sflag [#allocation3], 1
    %480 = vsyncpa %s479, 1
    %481 = vsyncpa [#allocation6], 1
    %s482 = scalar_lea.sflag [#allocation6], 1
    %483 = vsyncpa %s482, 1
    %484 = vsyncpa [#allocation4], 1
    %s485 = scalar_lea.sflag [#allocation4], 1
    %486 = vsyncpa %s485, 1

</llo_original>
